<compile_context>
chip_gen: v5e
topology: v5e:2x2
jax: 0.10.0
libtpu: 0.0.40
codegen_flags: <defaults>
</compile_context>

<pallas_src>
import functools

import jax
import jax.numpy as jnp
from jax.experimental import pallas as pl
from jax.experimental.pallas import tpu as pltpu


def _inv_pixel_shuffle_kernel(x_ref, sel_ref, o_ref, *, ratio, w, chunk, tc, th):
    """x_ref:   (tc, th, r*W)   rows = (c, oy), lanes = (ry, ox*r + rx)
       sel_ref: (chunk, chunk)  0/1 permutation: lane (oxl*r + rx) -> (rx, oxl)
       o_ref:   (tc, r, r, th, Wout)."""
    cw = chunk // ratio
    n_chunks = w // chunk
    sel = sel_ref[...]
    for ry in range(ratio):
        for j in range(n_chunks):
            lo = ry * w + j * chunk
            lhs = x_ref[:, :, lo:lo + chunk].reshape(tc * th, chunk).astype(sel.dtype)
            # 0/1 permutation matmul: exactly one unit term per output element,
            # so this is bit-exact pure data movement on the MXU.
            g = jnp.dot(lhs, sel, precision=jax.lax.Precision.HIGHEST,
                        preferred_element_type=jnp.float32)
            g = g.reshape(tc, th, ratio * cw)
            for rx in range(ratio):
                o_ref[:, ry, rx, :, j * cw:(j + 1) * cw] = (
                    g[:, :, rx * cw:(rx + 1) * cw].astype(o_ref.dtype))


def _pick_lane_chunk(w, ratio):
    """Lane-chunk of the per-row permutation matmul.  Must divide W and be a
    multiple of `ratio`.  Preferring ~ratio*256 keeps the selection matrix
    tiny and the MXU work per element O(chunk) (memory-bound) with per-phase
    output widths that are multiples of 128 lanes."""
    for cand in (256 * ratio, 128 * ratio, 512 * ratio, 64 * ratio):
        if cand <= w and w % cand == 0:
            return cand
    return w


def _pick_tiles(c, hout, row_bytes, budget_bytes):
    """Pick (tc, th): tc | C channels and th | Hout rows per tile such that the
    input slab tc*th*row_bytes stays near `budget_bytes` (double-buffered in +
    out slabs stay far below the VMEM limit on v5e/v6e/v7x)."""
    max_rows = max(1, budget_bytes // max(1, row_bytes))
    if hout <= max_rows:
        # Whole channels fit: tile over channels, keep full Hout rows.
        tcap = min(c, max(1, max_rows // hout))
        tc = max(d for d in range(1, tcap + 1) if c % d == 0)
        return tc, hout
    # A single channel exceeds the budget: tile rows inside a channel,
    # preferring a sublane-friendly (multiple of 8) divisor of Hout.
    divs = [d for d in range(1, hout + 1) if hout % d == 0]
    fit8 = [d for d in divs if d <= max_rows and d % 8 == 0]
    if fit8:
        return 1, max(fit8)
    fit = [d for d in divs if d <= max_rows]
    return 1, (max(fit) if fit and max(fit) % 8 == 0 else hout)


def inv_pixel_shuffle(x, ratio=2):
    b, c, h, w = x.shape
    assert w % ratio == 0 and h % ratio == 0, \
        'x, y, ratio : {}, {}, {}'.format(w, h, ratio)
    if ratio == 1:
        return x
    hout, wout = h // ratio, w // ratio
    rr = ratio * ratio

    # TODO(synk): integer inputs go through the f32 MXU path (exact up to 2^24).
    compute_dtype = jnp.bfloat16 if x.dtype == jnp.bfloat16 else jnp.float32

    chunk = _pick_lane_chunk(w, ratio)
    cw = chunk // ratio
    tc, th = _pick_tiles(c, hout,
                         row_bytes=ratio * w * x.dtype.itemsize,
                         budget_bytes=2 << 20)

    # chunk x chunk 0/1 permutation: sel[oxl*ratio + rx, rx*cw + oxl] = 1.
    col = jnp.arange(chunk)
    rx_idx = col // cw
    oxl = col % cw
    src = oxl * ratio + rx_idx
    sel = (jnp.arange(chunk)[:, None] == src[None, :]).astype(compute_dtype)

    # Free, contiguity-preserving view: lanes = (ry, w_in) per output row.
    x4 = x.reshape(b, c, hout, ratio * w)

    kernel = functools.partial(_inv_pixel_shuffle_kernel,
                               ratio=ratio, w=w, chunk=chunk, tc=tc, th=th)

    in_bytes = tc * th * ratio * w * x.dtype.itemsize
    out_bytes = tc * rr * th * wout * x.dtype.itemsize
    sel_bytes = chunk * chunk * jnp.dtype(compute_dtype).itemsize
    vmem_limit = int(min(64 << 20,
                         max(32 << 20,
                             2 * (in_bytes + out_bytes) + 2 * sel_bytes + (8 << 20))))

    out6 = pl.pallas_call(
        kernel,
        grid=(b, c // tc, hout // th),
        in_specs=[
            # input tile: one batch, one channel tile, one row tile
            pl.BlockSpec((None, tc, th, ratio * w),
                         lambda bi, ci, hi: (bi, ci, hi, 0)),
            # selection matrix: full array, VMEM-resident across all grid steps
            pl.BlockSpec((chunk, chunk), lambda bi, ci, hi: (0, 0)),
        ],
        out_specs=pl.BlockSpec((None, tc, ratio, ratio, th, wout),
                               lambda bi, ci, hi: (bi, ci, 0, 0, hi, 0)),
        out_shape=jax.ShapeDtypeStruct((b, c, ratio, ratio, hout, wout), x.dtype),
        compiler_params=pltpu.CompilerParams(
            dimension_semantics=("parallel", "parallel", "parallel"),
            vmem_limit_bytes=vmem_limit,
        ),
    )(x4, sel)

    # Free merge of adjacent dims -> PyTorch output layout (B, C*r*r, Hout, Wout).
    return out6.reshape(b, c * rr, hout, wout)


if __name__ == "__main__":
    key = jax.random.PRNGKey(0)
    N, C, H, W = 2, 4, 16, 16
    ratio = 2
    x = jax.random.normal(key, (N, C, H, W), jnp.float32)

    fwd = jax.jit(functools.partial(inv_pixel_shuffle, ratio=ratio))
    out = jax.block_until_ready(fwd(x))

    # Pure-JAX reference of the exact torch view/permute/view sequence.
    ref = (x.reshape(N, C, H // ratio, ratio, W // ratio, ratio)
             .transpose(0, 1, 3, 5, 2, 4)
             .reshape(N, C * ratio * ratio, H // ratio, W // ratio))

    assert out.shape == (N, C * ratio * ratio, H // ratio, W // ratio), out.shape
    assert out.dtype == x.dtype
    err = float(jnp.max(jnp.abs(out - ref)))
    assert err <= 1e-6, f"max abs error {err}"
    print("KERNEL_OK")
</pallas_src>

<mosaic_0001>
module attributes {stable_mosaic.version = 11 : i64} {
  func.func @_inv_pixel_shuffle_kernel(%arg0: i32, %arg1: i32, %arg2: i32, %arg3: memref<1x4x8x32xf32, #tpu.memory_space<vmem>>, %arg4: memref<16x16xf32, #tpu.memory_space<vmem>>, %arg5: memref<1x4x2x2x8x8xf32, #tpu.memory_space<vmem>>) attributes {dimension_semantics = [#tpu.dimension_semantics<parallel>, #tpu.dimension_semantics<parallel>, #tpu.dimension_semantics<parallel>], iteration_bounds = array<i64: 2, 1, 1>, scalar_prefetch = 0 : i64, scratch_operands = 0 : i64, tpu.core_type = #tpu.core_type<tc>, window_params = [{transform_indices = @transform_0, window_bounds = array<i64: 1, 4, 8, 32>}, {pipeline_mode = #tpu.pipeline_mode<synchronous>, transform_indices = @transform_1, window_bounds = array<i64: 16, 16>}, {transform_indices = @transform_2, window_bounds = array<i64: 1, 4, 2, 2, 8, 8>}]} {
    %c0 = arith.constant 0 : index
    %c0_0 = arith.constant 0 : index
    %0 = vector.load %arg4[%c0, %c0_0] : memref<16x16xf32, #tpu.memory_space<vmem>>, vector<16x16xf32>
    %c0_1 = arith.constant 0 : index
    %c0_2 = arith.constant 0 : index
    %c0_3 = arith.constant 0 : index
    %c0_4 = arith.constant 0 : index
    %1 = vector.load %arg3[%c0_1, %c0_2, %c0_3, %c0_4] : memref<1x4x8x32xf32, #tpu.memory_space<vmem>>, vector<1x4x8x16xf32>
    %2 = vector.shape_cast %1 : vector<1x4x8x16xf32> to vector<4x8x16xf32>
    %3 = vector.shape_cast %2 : vector<4x8x16xf32> to vector<32x16xf32>
    %cst = arith.constant dense<0.000000e+00> : vector<32x16xf32>
    %4 = tpu.matmul %3, %0, %cst {dimension_numbers = #tpu.dot_dimension_numbers<[1], [0], [0], [1], [0, 0, 1, 1], [], []>, precision = #tpu.contract_precision<fp32>} : vector<32x16xf32>, vector<16x16xf32>, vector<32x16xf32> -> vector<32x16xf32>
    %5 = vector.shape_cast %4 : vector<32x16xf32> to vector<4x8x16xf32>
    %6 = vector.extract_strided_slice %5 {offsets = [0, 0, 0], sizes = [4, 8, 8], strides = [1, 1, 1]} : vector<4x8x16xf32> to vector<4x8x8xf32>
    %c0_5 = arith.constant 0 : index
    %c0_6 = arith.constant 0 : index
    %c0_7 = arith.constant 0 : index
    %c0_8 = arith.constant 0 : index
    %c0_9 = arith.constant 0 : index
    %c0_10 = arith.constant 0 : index
    %7 = vector.load %arg5[%c0_5, %c0_6, %c0_7, %c0_8, %c0_9, %c0_10] : memref<1x4x2x2x8x8xf32, #tpu.memory_space<vmem>>, vector<1x4x1x1x8x8xf32>
    %8 = vector.shape_cast %7 : vector<1x4x1x1x8x8xf32> to vector<4x8x8xf32>
    %9 = vector.shape_cast %6 : vector<4x8x8xf32> to vector<1x4x1x1x8x8xf32>
    tpu.vector_store %arg5[%c0_5, %c0_6, %c0_7, %c0_8, %c0_9, %c0_10], %9 {strides = array<i32>} : memref<1x4x2x2x8x8xf32, #tpu.memory_space<vmem>>, vector<1x4x1x1x8x8xf32>,
    %10 = vector.extract_strided_slice %5 {offsets = [0, 0, 8], sizes = [4, 8, 8], strides = [1, 1, 1]} : vector<4x8x16xf32> to vector<4x8x8xf32>
    %c0_11 = arith.constant 0 : index
    %c0_12 = arith.constant 0 : index
    %c0_13 = arith.constant 0 : index
    %c1 = arith.constant 1 : index
    %c0_14 = arith.constant 0 : index
    %c0_15 = arith.constant 0 : index
    %11 = vector.load %arg5[%c0_11, %c0_12, %c0_13, %c1, %c0_14, %c0_15] : memref<1x4x2x2x8x8xf32, #tpu.memory_space<vmem>>, vector<1x4x1x1x8x8xf32>
    %12 = vector.shape_cast %11 : vector<1x4x1x1x8x8xf32> to vector<4x8x8xf32>
    %13 = vector.shape_cast %10 : vector<4x8x8xf32> to vector<1x4x1x1x8x8xf32>
    tpu.vector_store %arg5[%c0_11, %c0_12, %c0_13, %c1, %c0_14, %c0_15], %13 {strides = array<i32>} : memref<1x4x2x2x8x8xf32, #tpu.memory_space<vmem>>, vector<1x4x1x1x8x8xf32>,
    %c0_16 = arith.constant 0 : index
    %c0_17 = arith.constant 0 : index
    %c0_18 = arith.constant 0 : index
    %c16 = arith.constant 16 : index
    %14 = vector.load %arg3[%c0_16, %c0_17, %c0_18, %c16] : memref<1x4x8x32xf32, #tpu.memory_space<vmem>>, vector<1x4x8x16xf32>
    %15 = vector.shape_cast %14 : vector<1x4x8x16xf32> to vector<4x8x16xf32>
    %16 = vector.shape_cast %15 : vector<4x8x16xf32> to vector<32x16xf32>
    %cst_19 = arith.constant dense<0.000000e+00> : vector<32x16xf32>
    %17 = tpu.matmul %16, %0, %cst_19 {dimension_numbers = #tpu.dot_dimension_numbers<[1], [0], [0], [1], [0, 0, 1, 1], [], []>, precision = #tpu.contract_precision<fp32>} : vector<32x16xf32>, vector<16x16xf32>, vector<32x16xf32> -> vector<32x16xf32>
    %18 = vector.shape_cast %17 : vector<32x16xf32> to vector<4x8x16xf32>
    %19 = vector.extract_strided_slice %18 {offsets = [0, 0, 0], sizes = [4, 8, 8], strides = [1, 1, 1]} : vector<4x8x16xf32> to vector<4x8x8xf32>
    %c0_20 = arith.constant 0 : index
    %c0_21 = arith.constant 0 : index
    %c1_22 = arith.constant 1 : index
    %c0_23 = arith.constant 0 : index
    %c0_24 = arith.constant 0 : index
    %c0_25 = arith.constant 0 : index
    %20 = vector.load %arg5[%c0_20, %c0_21, %c1_22, %c0_23, %c0_24, %c0_25] : memref<1x4x2x2x8x8xf32, #tpu.memory_space<vmem>>, vector<1x4x1x1x8x8xf32>
    %21 = vector.shape_cast %20 : vector<1x4x1x1x8x8xf32> to vector<4x8x8xf32>
    %22 = vector.shape_cast %19 : vector<4x8x8xf32> to vector<1x4x1x1x8x8xf32>
    tpu.vector_store %arg5[%c0_20, %c0_21, %c1_22, %c0_23, %c0_24, %c0_25], %22 {strides = array<i32>} : memref<1x4x2x2x8x8xf32, #tpu.memory_space<vmem>>, vector<1x4x1x1x8x8xf32>,
    %23 = vector.extract_strided_slice %18 {offsets = [0, 0, 8], sizes = [4, 8, 8], strides = [1, 1, 1]} : vector<4x8x16xf32> to vector<4x8x8xf32>
    %c0_26 = arith.constant 0 : index
    %c0_27 = arith.constant 0 : index
    %c1_28 = arith.constant 1 : index
    %c1_29 = arith.constant 1 : index
    %c0_30 = arith.constant 0 : index
    %c0_31 = arith.constant 0 : index
    %24 = vector.load %arg5[%c0_26, %c0_27, %c1_28, %c1_29, %c0_30, %c0_31] : memref<1x4x2x2x8x8xf32, #tpu.memory_space<vmem>>, vector<1x4x1x1x8x8xf32>
    %25 = vector.shape_cast %24 : vector<1x4x1x1x8x8xf32> to vector<4x8x8xf32>
    %26 = vector.shape_cast %23 : vector<4x8x8xf32> to vector<1x4x1x1x8x8xf32>
    tpu.vector_store %arg5[%c0_26, %c0_27, %c1_28, %c1_29, %c0_30, %c0_31], %26 {strides = array<i32>} : memref<1x4x2x2x8x8xf32, #tpu.memory_space<vmem>>, vector<1x4x1x1x8x8xf32>,
    return
  }
  func.func @transform_0(%arg0: i32, %arg1: i32, %arg2: i32) -> (i32, i32, i32, i32) {
    %c0_i32 = arith.constant 0 : i32
    %c0_i32_0 = arith.constant 0 : i32
    return %arg0, %arg1, %arg2, %c0_i32 : i32, i32, i32, i32
  }
  func.func @transform_1(%arg0: i32, %arg1: i32, %arg2: i32) -> (i32, i32) {
    %c0_i32 = arith.constant 0 : i32
    %c0_i32_0 = arith.constant 0 : i32
    %c0_i32_1 = arith.constant 0 : i32
    return %c0_i32, %c0_i32_0 : i32, i32
  }
  func.func @transform_2(%arg0: i32, %arg1: i32, %arg2: i32) -> (i32, i32, i32, i32, i32, i32) {
    %c0_i32 = arith.constant 0 : i32
    %c0_i32_0 = arith.constant 0 : i32
    %c0_i32_1 = arith.constant 0 : i32
    %c0_i32_2 = arith.constant 0 : i32
    return %arg0, %arg1, %c0_i32, %c0_i32_0, %arg2, %c0_i32_1 : i32, i32, i32, i32, i32, i32
  }
}

</mosaic_0001>

<llo_original>
// kernel: inv_pixel_shuffle.1
$region0: #{inv_pixel_shuffle.1}
  #allocation0 [shape = 'u32[]', space=smem, size = 0x4, offset = 0x4, fixed_abs, tag = 'smem constant byte address 0x4 - core index']
  #allocation1 [shape = 'u32[72,128]{1,0:T(1,128)}', space=vmem, size = 0x9000, scoped, tag = 'internal scratch']
  %s0 = inlined_call_operand.vmem [shape: f32[2,4,8,32], index: 0, kind: input, shape index: {}]
  %s1 = inlined_call_operand.vmem [shape: f32[16,16], index: 1, kind: input, shape index: {}]
  %s2 = inlined_call_operand.vmem [shape: f32[2,4,2,2,8,8], index: 2, kind: output, shape index: {}]
  %s3 = sld [smem:[#allocation0]]
  $region41: #{inv_pixel_shuffle.1} parent=0
    _
  %s5 = ssub.s32 1, %s3
  %s6 = scalar_select 0, %s5, %s3
  loop: start=0, step=1, limit=4
  $region2: #{inv_pixel_shuffle.1} parent=0 // loop_pre_header
    _
  $region3: #{inv_pixel_shuffle.1} parent=0 // loop_header
    %s8 = sphi 0, %s12
    %p9 = scmp.ge.s32.totalorder %s8, 4
    %s15 = sphi 0, %s34
    %s16 = sphi 0, %s30
    %s17 = sphi 0, %s26
    %s18 = sphi 0, %s15
    %s19 = sphi 0, %s16
    %s20 = sphi 0, %s17
    %s21 = sphi 0, %s18
    %s22 = sphi 0, %s19
    %s23 = sphi 0, %s20
    %s41 = sphi 0, %s43
    %s44 = sphi 0, %s41
    %s45 = sphi 0, %s44
    %s61 = sphi 0, %s45
    %s65 = sphi 0, %s65
    %s67 = sphi 0, %s65
    %s68 = sphi 0, %s67
    %s82 = sphi 0, %s68
    %s92 = sphi 0, %s94
    %s95 = sphi 0, %s92
    %s96 = sphi 0, %s95
    %s112 = sphi 0, %s96
  $region4: #{inv_pixel_shuffle.1} parent=0 // loop_header_branch
    %11 = sbr.rel (%p9) target = $region8
  $region5: #{inv_pixel_shuffle.1} parent=0 // loop_body
    %s13 = ssub.s32 %s8, 1
    %s14 = ssub.s32 %s8, 2
    %s24 = sadd.s32 1, %s17
    %p25 = scmp.ge.s32.totalorder %s24, 1
    %s26 = scalar_select %p25, 0, %s24
    %s27 = sadd.s32 1, %s16
    %s28 = scalar_select %p25, %s27, %s16
    %p29 = scmp.ge.s32.totalorder %s28, 1
    %s30 = scalar_select %p29, 0, %s28
    %s31 = sadd.s32 1, %s15
    %s32 = scalar_select %p29, %s31, %s15
    %p33 = scmp.ge.s32.totalorder %s32, 2
    %s34 = scalar_select %p33, 0, %s32
    %s35 = ssub.s32 %s15, %s34
    %s36 = ssub.s32 %s16, %s30
    %s37 = sor.u32 %s35, %s36
    %s38 = ssub.s32 %s17, %s26
    %s39 = sor.u32 %s37, %s38
    %p40 = scmp.eq.s32.totalorder %s39, 0
    %s42 = sadd.s32 %s41, 1
    %s43 = scalar_select %p40, %s41, %s42
    %p46 = pneg %p40
    %p47 = scmp.eq.s32.totalorder %s8, 1
    %p48 = por %p46, %p47
    %p49 = scmp.ne.s32.totalorder %s41, %s44
    %p50 = scmp.eq.s32.totalorder %s8, 0
    %p51 = por %p49, %p50
    %p52 = scmp.ne.s32.totalorder %s41, %s44
    %p53 = scmp.eq.s32.totalorder %s13, 1
    %p54 = por %p52, %p53
    %p55 = scmp.ne.s32.totalorder %s44, %s45
    %p56 = scmp.eq.s32.totalorder %s13, 0
    %p57 = por %p55, %p56
    %p58 = scmp.ne.s32.totalorder %s44, %s45
    %p59 = scmp.eq.s32.totalorder %s14, 1
    %p60 = por %p58, %p59
    %p62 = scmp.ne.s32.totalorder %s45, %s61
    %p63 = scmp.eq.s32.totalorder %s14, 0
    %p64 = por %p62, %p63
    %s66 = sadd.s32 %s65, 1
    %p69 = scmp.eq.s32.totalorder %s8, 1
    %p70 = scmp.ne.s32.totalorder %s65, %s67
    %p71 = scmp.eq.s32.totalorder %s8, 0
    %p72 = por %p70, %p71
    %p73 = scmp.ne.s32.totalorder %s65, %s67
    %p74 = scmp.eq.s32.totalorder %s13, 1
    %p75 = por %p73, %p74
    %p76 = scmp.ne.s32.totalorder %s67, %s68
    %p77 = scmp.eq.s32.totalorder %s13, 0
    %p78 = por %p76, %p77
    %p79 = scmp.ne.s32.totalorder %s67, %s68
    %p80 = scmp.eq.s32.totalorder %s14, 1
    %p81 = por %p79, %p80
    %p83 = scmp.ne.s32.totalorder %s68, %s82
    %p84 = scmp.eq.s32.totalorder %s14, 0
    %p85 = por %p83, %p84
    %s86 = ssub.s32 %s15, %s34
    %s87 = ssub.s32 %s16, %s30
    %s88 = sor.u32 %s86, %s87
    %s89 = ssub.s32 %s17, %s26
    %s90 = sor.u32 %s88, %s89
    %p91 = scmp.eq.s32.totalorder %s90, 0
    %s93 = sadd.s32 %s92, 1
    %s94 = scalar_select %p91, %s92, %s93
    %p97 = pneg %p91
    %p98 = scmp.eq.s32.totalorder %s8, 1
    %p99 = por %p97, %p98
    %p100 = scmp.ne.s32.totalorder %s92, %s95
    %p101 = scmp.eq.s32.totalorder %s8, 0
    %p102 = por %p100, %p101
    %p103 = scmp.ne.s32.totalorder %s92, %s95
    %p104 = scmp.eq.s32.totalorder %s13, 1
    %p105 = por %p103, %p104
    %p106 = scmp.ne.s32.totalorder %s95, %s96
    %p107 = scmp.eq.s32.totalorder %s13, 0
    %p108 = por %p106, %p107
    %p109 = scmp.ne.s32.totalorder %s95, %s96
    %p110 = scmp.eq.s32.totalorder %s14, 1
    %p111 = por %p109, %p110
    %p113 = scmp.ne.s32.totalorder %s96, %s112
    %p114 = scmp.eq.s32.totalorder %s14, 0
    %p115 = por %p113, %p114
    %p116 = scmp.le.s32.totalorder 1, %s8
    %p117 = scmp.lt.s32.totalorder %s8, 3
    %p118 = pnand %p116, %p117
    %p119 = pneg %p118
    // Predicated region
    $region9: #{inv_pixel_shuffle.1} parent=5 // pred_check
      _
    $region10: #{inv_pixel_shuffle.1} parent=5 // pred_check_branch
      %121 = sbr.rel (%p118) target = $region12
    $region11: #{inv_pixel_shuffle.1} parent=5 // pred_region
      %s122 = ssub.s32 %s8, 1
      // Predicated region
      $region13: #{inv_pixel_shuffle.1} parent=11 // pred_check
        %p123 = pneg %p78
      $region14: #{inv_pixel_shuffle.1} parent=11 // pred_check_branch
        %125 = sbr.rel (%p123) target = $region16
      $region15: #{inv_pixel_shuffle.1} parent=11 // pred_region
        _
      $region16: #{inv_pixel_shuffle.1} parent=11 // pred_fallthru
        _
    $region12: #{inv_pixel_shuffle.1} parent=5 // pred_fallthru
      _
    %p126 = scmp.lt.s32.totalorder %s8, 2
    // Predicated region
    $region17: #{inv_pixel_shuffle.1} parent=5 // pred_check
      %p127 = pneg %p126
    $region18: #{inv_pixel_shuffle.1} parent=5 // pred_check_branch
      %129 = sbr.rel (%p127) target = $region20
    $region19: #{inv_pixel_shuffle.1} parent=5 // pred_region
      // Predicated region
      $region21: #{inv_pixel_shuffle.1} parent=19 // pred_check
        %p130 = pneg %p51
      $region22: #{inv_pixel_shuffle.1} parent=19 // pred_check_branch
        %132 = sbr.rel (%p130) target = $region24
      $region23: #{inv_pixel_shuffle.1} parent=19 // pred_region
        %s133 = smul.u32 4, %s16
        %p134 = scmp.lt.s32.totalorder %s15, 1
        %s135 = scalar_select %p134, %s15, 1
        %p136 = scmp.lt.s32.totalorder %s133, 3
        %s137 = scalar_select %p136, %s133, 3
        %p138 = scmp.lt.s32.totalorder %s17, 0
        %s139 = scalar_select %p138, %s17, 0
        %s140 = sadd.s32 %s139, %s137
        %s141 = smul.addr %s135, 4
        %s142 = sadd.s32 %s140, %s141
        %s143 = smul.addr %s142, 8
        %s144 = scalar_lea.vmem %s0, %s143
        %s145 = smul.u32 4, %s16
      $region24: #{inv_pixel_shuffle.1} parent=19 // pred_fallthru
        _
    $region20: #{inv_pixel_shuffle.1} parent=5 // pred_fallthru
      _
    %p146 = scmp.le.s32.totalorder 1, %s8
    %p147 = scmp.lt.s32.totalorder %s8, 3
    %p148 = pnand %p146, %p147
    %p149 = pneg %p148
    // Predicated region
    $region25: #{inv_pixel_shuffle.1} parent=5 // pred_check
      _
    $region26: #{inv_pixel_shuffle.1} parent=5 // pred_check_branch
      %151 = sbr.rel (%p148) target = $region28
    $region27: #{inv_pixel_shuffle.1} parent=5 // pred_region
      %s152 = ssub.s32 %s8, 1
      %s153 = smul.u32 4, %s19
      %p154 = scmp.lt.s32.totalorder %s18, 1
      %s155 = scalar_select %p154, %s18, 1
      %p156 = scmp.lt.s32.totalorder %s153, 3
      %s157 = scalar_select %p156, %s153, 3
      %p158 = scmp.lt.s32.totalorder %s20, 0
      %s159 = scalar_select %p158, %s20, 0
      %s160 = sadd.s32 %s159, %s157
      %s161 = smul.addr %s155, 4
      %s162 = sadd.s32 %s160, %s161
      %s163 = smul.addr %s162, 8
      %s164 = scalar_lea.vmem %s0, %s163
      %p165 = pneg %p57
      %p166 = pneg %p54
      %p167 = pneg %p78
      %p168 = pneg %p75
      %p169 = pneg %p108
      %p170 = pneg %p105
      %s171 = smul.u32 4, %s19
      %p172 = scmp.lt.s32.totalorder %s18, 1
      %s173 = scalar_select %p172, %s18, 1
      %p174 = scmp.lt.s32.totalorder %s171, 3
      %s175 = scalar_select %p174, %s171, 3
      %p176 = scmp.lt.s32.totalorder %s20, 0
      %s177 = scalar_select %p176, %s20, 0
      %s178 = smul.addr %s175, 4
      %s179 = sadd.s32 %s177, %s178
      %s180 = smul.addr %s173, 16
      %s181 = sadd.s32 %s179, %s180
      %s182 = smul.addr %s181, 8
      %s183 = scalar_lea.vmem %s2, %s182
      %s184 = smul.u32 4, %s19
      %p185 = scmp.lt.s32.totalorder %s18, 1
      %s186 = scalar_select %p185, %s18, 1
      %p187 = scmp.lt.s32.totalorder %s184, 3
      %s188 = scalar_select %p187, %s184, 3
      %p189 = scmp.lt.s32.totalorder %s20, 0
      %s190 = scalar_select %p189, %s20, 0
      %s191 = sadd.s32 %s190, %s188
      %s192 = smul.addr %s186, 4
      %s193 = sadd.s32 %s191, %s192
      %s194 = smul.addr %s193, 8
      %s195 = scalar_lea.vmem %s0, %s194
      %s196 = smul.u32 4, %s19
      %s197 = smul.u32 4, %s19
      %p198 = scmp.lt.s32.totalorder %s18, 1
      %s199 = scalar_select %p198, %s18, 1
      %p200 = scmp.lt.s32.totalorder %s197, 3
      %s201 = scalar_select %p200, %s197, 3
      %p202 = scmp.lt.s32.totalorder %s20, 0
      %s203 = scalar_select %p202, %s20, 0
      %s204 = smul.addr %s201, 4
      %s205 = sadd.s32 %s203, %s204
      %s206 = smul.addr %s199, 16
      %s207 = sadd.s32 %s205, %s206
      %s208 = smul.addr %s207, 8
      %s209 = scalar_lea.vmem %s2, %s208
      %s210 = smul.u32 4, %s19
      %v211 = vld [vmem:[%s1] sm:$0xff]
      %v212 = vld [vmem:[%s1 + $0x8] sm:$0xff]
      %v213 = vld [vmem:[%s195] sm:$0xff]
      %v214 = vld [vmem:[%s195 + $0x8] sm:$0xff]
      %v215 = vld [vmem:[%s195 + $0x10] sm:$0xff]
      %v216 = vld [vmem:[%s195 + $0x18] sm:$0xff]
      %vm217 = vcmask 130048
      %v219 = vsel %vm217, %v213, 0
      %v222 = vsel %vm217, %v214, 0
      %v225 = vsel %vm217, %v215, 0
      %v228 = vsel %vm217, %v216, 0
      %230 = vmatpush.msra.mxu0 0.0
      %231 = vmatpush.msra.mxu0 0.0
      %232 = vmatpush.msra.mxu0 0.0
      %233 = vmatpush.msra.mxu0 0.0
      %234 = vmatpush.msra.mxu0 0.0
      %235 = vmatpush.msra.mxu0 0.0
      %236 = vmatpush.msra.mxu0 0.0
      %237 = vmatpush.msra.mxu0 0.0
      %238 = vmatpush.msra.mxu0 0.0
      %239 = vmatpush.msra.mxu0 0.0
      %240 = vmatpush.msra.mxu0 0.0
      %241 = vmatpush.msra.mxu0 0.0
      %242 = vmatpush.msra.mxu0 0.0
      %243 = vmatpush.msra.mxu0 0.0
      %v244 = vand.u32 %v212, 4294901760
      %245 = vmatpush.msra.mxu0 %v244
      %v246 = vand.u32 %v211, 4294901760
      %247 = vmatpush.msra.mxu0 %v246
      %v248 = vand.u32 %v219, 4294901760
      %v249 = vsub.f32 %v219, %v248
      %v250 = vand.u32 %v249, 4294901760
      %v251 = vsub.f32 %v249, %v250
      %v252 = vand.u32 %v251, 4294901760
      %253 = vmatmul.f32.gmra.mxu0 %v252
      %v254 = vpop.f32.mrf.mxu0
      %v255 = vadd.f32 0.0, %v254
      %v256 = vand.u32 %v222, 4294901760
      %v257 = vsub.f32 %v222, %v256
      %v258 = vand.u32 %v257, 4294901760
      %v259 = vsub.f32 %v257, %v258
      %v260 = vand.u32 %v259, 4294901760
      %261 = vmatmul.f32.gmra.mxu0 %v260
      %v262 = vpop.f32.mrf.mxu0
      %v263 = vadd.f32 0.0, %v262
      %v264 = vand.u32 %v225, 4294901760
      %v265 = vsub.f32 %v225, %v264
      %v266 = vand.u32 %v265, 4294901760
      %v267 = vsub.f32 %v265, %v266
      %v268 = vand.u32 %v267, 4294901760
      %269 = vmatmul.f32.gmra.mxu0 %v268
      %v270 = vpop.f32.mrf.mxu0
      %v271 = vadd.f32 0.0, %v270
      %v272 = vand.u32 %v228, 4294901760
      %v273 = vsub.f32 %v228, %v272
      %v274 = vand.u32 %v273, 4294901760
      %v275 = vsub.f32 %v273, %v274
      %v276 = vand.u32 %v275, 4294901760
      %277 = vmatmul.f32.gmra.mxu0 %v276
      %v278 = vpop.f32.mrf.mxu0
      %v279 = vadd.f32 0.0, %v278
      %280 = vdwg.mxu0
      %281 = vmatpush.msra.mxu0 0.0
      %282 = vmatpush.msra.mxu0 0.0
      %283 = vmatpush.msra.mxu0 0.0
      %284 = vmatpush.msra.mxu0 0.0
      %285 = vmatpush.msra.mxu0 0.0
      %286 = vmatpush.msra.mxu0 0.0
      %287 = vmatpush.msra.mxu0 0.0
      %288 = vmatpush.msra.mxu0 0.0
      %289 = vmatpush.msra.mxu0 0.0
      %290 = vmatpush.msra.mxu0 0.0
      %291 = vmatpush.msra.mxu0 0.0
      %292 = vmatpush.msra.mxu0 0.0
      %293 = vmatpush.msra.mxu0 0.0
      %294 = vmatpush.msra.mxu0 0.0
      %v295 = vand.u32 %v212, 4294901760
      %v296 = vsub.f32 %v212, %v295
      %v297 = vand.u32 %v296, 4294901760
      %v298 = vsub.f32 %v296, %v297
      %v299 = vand.u32 %v298, 4294901760
      %300 = vmatpush.msra.mxu0 %v299
      %v301 = vand.u32 %v211, 4294901760
      %v302 = vsub.f32 %v211, %v301
      %v303 = vand.u32 %v302, 4294901760
      %v304 = vsub.f32 %v302, %v303
      %v305 = vand.u32 %v304, 4294901760
      %306 = vmatpush.msra.mxu0 %v305
      %v307 = vand.u32 %v219, 4294901760
      %308 = vmatmul.f32.gmra.mxu0 %v307
      %v309 = vpop.f32.mrf.mxu0
      %v310 = vadd.f32 %v255, %v309
      %v311 = vand.u32 %v222, 4294901760
      %312 = vmatmul.f32.gmra.mxu0 %v311
      %v313 = vpop.f32.mrf.mxu0
      %v314 = vadd.f32 %v263, %v313
      %v315 = vand.u32 %v225, 4294901760
      %316 = vmatmul.f32.gmra.mxu0 %v315
      %v317 = vpop.f32.mrf.mxu0
      %v318 = vadd.f32 %v271, %v317
      %v319 = vand.u32 %v228, 4294901760
      %320 = vmatmul.f32.gmra.mxu0 %v319
      %v321 = vpop.f32.mrf.mxu0
      %v322 = vadd.f32 %v279, %v321
      %323 = vdwg.mxu0
      %324 = vmatpush.msra.mxu0 0.0
      %325 = vmatpush.msra.mxu0 0.0
      %326 = vmatpush.msra.mxu0 0.0
      %327 = vmatpush.msra.mxu0 0.0
      %328 = vmatpush.msra.mxu0 0.0
      %329 = vmatpush.msra.mxu0 0.0
      %330 = vmatpush.msra.mxu0 0.0
      %331 = vmatpush.msra.mxu0 0.0
      %332 = vmatpush.msra.mxu0 0.0
      %333 = vmatpush.msra.mxu0 0.0
      %334 = vmatpush.msra.mxu0 0.0
      %335 = vmatpush.msra.mxu0 0.0
      %336 = vmatpush.msra.mxu0 0.0
      %337 = vmatpush.msra.mxu0 0.0
      %v338 = vand.u32 %v212, 4294901760
      %v339 = vsub.f32 %v212, %v338
      %340 = vmatpush.msra.mxu0 %v339
      %v341 = vand.u32 %v211, 4294901760
      %v342 = vsub.f32 %v211, %v341
      %343 = vmatpush.msra.mxu0 %v342
      %v344 = vand.u32 %v219, 4294901760
      %v345 = vsub.f32 %v219, %v344
      %346 = vmatmul.f32.gmra.mxu0 %v345
      %v347 = vpop.f32.mrf.mxu0
      %v348 = vadd.f32 %v310, %v347
      %v349 = vand.u32 %v222, 4294901760
      %v350 = vsub.f32 %v222, %v349
      %351 = vmatmul.f32.gmra.mxu0 %v350
      %v352 = vpop.f32.mrf.mxu0
      %v353 = vadd.f32 %v314, %v352
      %v354 = vand.u32 %v225, 4294901760
      %v355 = vsub.f32 %v225, %v354
      %356 = vmatmul.f32.gmra.mxu0 %v355
      %v357 = vpop.f32.mrf.mxu0
      %v358 = vadd.f32 %v318, %v357
      %v359 = vand.u32 %v228, 4294901760
      %v360 = vsub.f32 %v228, %v359
      %361 = vmatmul.f32.gmra.mxu0 %v360
      %v362 = vpop.f32.mrf.mxu0
      %v363 = vadd.f32 %v322, %v362
      %364 = vdwg.mxu0
      %365 = vmatpush.msra.mxu0 0.0
      %366 = vmatpush.msra.mxu0 0.0
      %367 = vmatpush.msra.mxu0 0.0
      %368 = vmatpush.msra.mxu0 0.0
      %369 = vmatpush.msra.mxu0 0.0
      %370 = vmatpush.msra.mxu0 0.0
      %371 = vmatpush.msra.mxu0 0.0
      %372 = vmatpush.msra.mxu0 0.0
      %373 = vmatpush.msra.mxu0 0.0
      %374 = vmatpush.msra.mxu0 0.0
      %375 = vmatpush.msra.mxu0 0.0
      %376 = vmatpush.msra.mxu0 0.0
      %377 = vmatpush.msra.mxu0 0.0
      %378 = vmatpush.msra.mxu0 0.0
      %v379 = vand.u32 %v212, 4294901760
      %380 = vmatpush.msra.mxu0 %v379
      %v381 = vand.u32 %v211, 4294901760
      %382 = vmatpush.msra.mxu0 %v381
      %v383 = vand.u32 %v219, 4294901760
      %v384 = vsub.f32 %v219, %v383
      %v385 = vand.u32 %v384, 4294901760
      %386 = vmatmul.f32.gmra.mxu0 %v385
      %v387 = vpop.f32.mrf.mxu0
      %v388 = vadd.f32 %v348, %v387
      %v389 = vand.u32 %v222, 4294901760
      %v390 = vsub.f32 %v222, %v389
      %v391 = vand.u32 %v390, 4294901760
      %392 = vmatmul.f32.gmra.mxu0 %v391
      %v393 = vpop.f32.mrf.mxu0
      %v394 = vadd.f32 %v353, %v393
      %v395 = vand.u32 %v225, 4294901760
      %v396 = vsub.f32 %v225, %v395
      %v397 = vand.u32 %v396, 4294901760
      %398 = vmatmul.f32.gmra.mxu0 %v397
      %v399 = vpop.f32.mrf.mxu0
      %v400 = vadd.f32 %v358, %v399
      %v401 = vand.u32 %v228, 4294901760
      %v402 = vsub.f32 %v228, %v401
      %v403 = vand.u32 %v402, 4294901760
      %404 = vmatmul.f32.gmra.mxu0 %v403
      %v405 = vpop.f32.mrf.mxu0
      %v406 = vadd.f32 %v363, %v405
      %407 = vdwg.mxu0
      %408 = vmatpush.msra.mxu0 0.0
      %409 = vmatpush.msra.mxu0 0.0
      %410 = vmatpush.msra.mxu0 0.0
      %411 = vmatpush.msra.mxu0 0.0
      %412 = vmatpush.msra.mxu0 0.0
      %413 = vmatpush.msra.mxu0 0.0
      %414 = vmatpush.msra.mxu0 0.0
      %415 = vmatpush.msra.mxu0 0.0
      %416 = vmatpush.msra.mxu0 0.0
      %417 = vmatpush.msra.mxu0 0.0
      %418 = vmatpush.msra.mxu0 0.0
      %419 = vmatpush.msra.mxu0 0.0
      %420 = vmatpush.msra.mxu0 0.0
      %421 = vmatpush.msra.mxu0 0.0
      %v422 = vand.u32 %v212, 4294901760
      %v423 = vsub.f32 %v212, %v422
      %v424 = vand.u32 %v423, 4294901760
      %425 = vmatpush.msra.mxu0 %v424
      %v426 = vand.u32 %v211, 4294901760
      %v427 = vsub.f32 %v211, %v426
      %v428 = vand.u32 %v427, 4294901760
      %429 = vmatpush.msra.mxu0 %v428
      %v430 = vand.u32 %v219, 4294901760
      %431 = vmatmul.f32.gmra.mxu0 %v430
      %v432 = vpop.f32.mrf.mxu0
      %v433 = vadd.f32 %v388, %v432
      %v434 = vand.u32 %v222, 4294901760
      %435 = vmatmul.f32.gmra.mxu0 %v434
      %v436 = vpop.f32.mrf.mxu0
      %v437 = vadd.f32 %v394, %v436
      %v438 = vand.u32 %v225, 4294901760
      %439 = vmatmul.f32.gmra.mxu0 %v438
      %v440 = vpop.f32.mrf.mxu0
      %v441 = vadd.f32 %v400, %v440
      %v442 = vand.u32 %v228, 4294901760
      %443 = vmatmul.f32.gmra.mxu0 %v442
      %v444 = vpop.f32.mrf.mxu0
      %v445 = vadd.f32 %v406, %v444
      %446 = vdwg.mxu0
      %447 = vmatpush.msra.mxu0 0.0
      %448 = vmatpush.msra.mxu0 0.0
      %449 = vmatpush.msra.mxu0 0.0
      %450 = vmatpush.msra.mxu0 0.0
      %451 = vmatpush.msra.mxu0 0.0
      %452 = vmatpush.msra.mxu0 0.0
      %453 = vmatpush.msra.mxu0 0.0
      %454 = vmatpush.msra.mxu0 0.0
      %455 = vmatpush.msra.mxu0 0.0
      %456 = vmatpush.msra.mxu0 0.0
      %457 = vmatpush.msra.mxu0 0.0
      %458 = vmatpush.msra.mxu0 0.0
      %459 = vmatpush.msra.mxu0 0.0
      %460 = vmatpush.msra.mxu0 0.0
      %v461 = vand.u32 %v212, 4294901760
      %462 = vmatpush.msra.mxu0 %v461
      %v463 = vand.u32 %v211, 4294901760
      %464 = vmatpush.msra.mxu0 %v463
      %v465 = vand.u32 %v219, 4294901760
      %466 = vmatmul.f32.gmra.mxu0 %v465
      %v467 = vpop.f32.mrf.mxu0
      %v468 = vadd.f32 %v433, %v467
      %v469 = vand.u32 %v222, 4294901760
      %470 = vmatmul.f32.gmra.mxu0 %v469
      %v471 = vpop.f32.mrf.mxu0
      %v472 = vadd.f32 %v437, %v471
      %v473 = vand.u32 %v225, 4294901760
      %474 = vmatmul.f32.gmra.mxu0 %v473
      %v475 = vpop.f32.mrf.mxu0
      %v476 = vadd.f32 %v441, %v475
      %v477 = vand.u32 %v228, 4294901760
      %478 = vmatmul.f32.gmra.mxu0 %v477
      %v479 = vpop.f32.mrf.mxu0
      %v480 = vadd.f32 %v445, %v479
      %481 = vdwg.mxu0
      %vm482 = vcmask 64512
      %483 = vst.msk [vmem:[%s209] sm:$0xff] %vm482, %v468
      %484 = vst.msk [vmem:[%s209 + $0x20] sm:$0xff] %vm482, %v472
      %485 = vst.msk [vmem:[%s209 + $0x40] sm:$0xff] %vm482, %v476
      %486 = vst.msk [vmem:[%s209 + $0x60] sm:$0xff] %vm482, %v480
      %491 = vrot.lane.b32.xlu0 %v468, 120
      %v492 = vpop.permute.xlu0 %491
      %493 = vrot.lane.b32.xlu0 %v472, 120
      %v494 = vpop.permute.xlu0 %493
      %495 = vrot.lane.b32.xlu0 %v476, 120
      %v496 = vpop.permute.xlu0 %495
      %497 = vrot.lane.b32.xlu0 %v480, 120
      %v498 = vpop.permute.xlu0 %497
      %s503 = scalar_lea.vmem %s209, 8
      %504 = vst.msk [vmem:[%s503] sm:$0xff] %vm482, %v492
      %505 = vst.msk [vmem:[%s503 + $0x20] sm:$0xff] %vm482, %v494
      %506 = vst.msk [vmem:[%s503 + $0x40] sm:$0xff] %vm482, %v496
      %507 = vst.msk [vmem:[%s503 + $0x60] sm:$0xff] %vm482, %v498
      %v508 = vld [vmem:[%s195] sm:$0xff]
      %v509 = vld [vmem:[%s195 + $0x8] sm:$0xff]
      %v510 = vld [vmem:[%s195 + $0x10] sm:$0xff]
      %v511 = vld [vmem:[%s195 + $0x18] sm:$0xff]
      %516 = vrot.lane.b32.xlu0 %v508, 112
      %v517 = vpop.permute.xlu0 %516
      %518 = vrot.lane.b32.xlu0 %v509, 112
      %v519 = vpop.permute.xlu0 %518
      %520 = vrot.lane.b32.xlu0 %v510, 112
      %v521 = vpop.permute.xlu0 %520
      %522 = vrot.lane.b32.xlu0 %v511, 112
      %v523 = vpop.permute.xlu0 %522
      %v524 = vsel %vm217, %v517, 0
      %v526 = vsel %vm217, %v519, 0
      %v528 = vsel %vm217, %v521, 0
      %v530 = vsel %vm217, %v523, 0
      %532 = vmatpush.msra.mxu0 0.0
      %533 = vmatpush.msra.mxu0 0.0
      %534 = vmatpush.msra.mxu0 0.0
      %535 = vmatpush.msra.mxu0 0.0
      %536 = vmatpush.msra.mxu0 0.0
      %537 = vmatpush.msra.mxu0 0.0
      %538 = vmatpush.msra.mxu0 0.0
      %539 = vmatpush.msra.mxu0 0.0
      %540 = vmatpush.msra.mxu0 0.0
      %541 = vmatpush.msra.mxu0 0.0
      %542 = vmatpush.msra.mxu0 0.0
      %543 = vmatpush.msra.mxu0 0.0
      %544 = vmatpush.msra.mxu0 0.0
      %545 = vmatpush.msra.mxu0 0.0
      %v546 = vand.u32 %v212, 4294901760
      %547 = vmatpush.msra.mxu0 %v546
      %v548 = vand.u32 %v211, 4294901760
      %549 = vmatpush.msra.mxu0 %v548
      %v550 = vand.u32 %v524, 4294901760
      %v551 = vsub.f32 %v524, %v550
      %v552 = vand.u32 %v551, 4294901760
      %v553 = vsub.f32 %v551, %v552
      %v554 = vand.u32 %v553, 4294901760
      %555 = vmatmul.f32.gmra.mxu0 %v554
      %v556 = vpop.f32.mrf.mxu0
      %v557 = vadd.f32 0.0, %v556
      %v558 = vand.u32 %v526, 4294901760
      %v559 = vsub.f32 %v526, %v558
      %v560 = vand.u32 %v559, 4294901760
      %v561 = vsub.f32 %v559, %v560
      %v562 = vand.u32 %v561, 4294901760
      %563 = vmatmul.f32.gmra.mxu0 %v562
      %v564 = vpop.f32.mrf.mxu0
      %v565 = vadd.f32 0.0, %v564
      %v566 = vand.u32 %v528, 4294901760
      %v567 = vsub.f32 %v528, %v566
      %v568 = vand.u32 %v567, 4294901760
      %v569 = vsub.f32 %v567, %v568
      %v570 = vand.u32 %v569, 4294901760
      %571 = vmatmul.f32.gmra.mxu0 %v570
      %v572 = vpop.f32.mrf.mxu0
      %v573 = vadd.f32 0.0, %v572
      %v574 = vand.u32 %v530, 4294901760
      %v575 = vsub.f32 %v530, %v574
      %v576 = vand.u32 %v575, 4294901760
      %v577 = vsub.f32 %v575, %v576
      %v578 = vand.u32 %v577, 4294901760
      %579 = vmatmul.f32.gmra.mxu0 %v578
      %v580 = vpop.f32.mrf.mxu0
      %v581 = vadd.f32 0.0, %v580
      %582 = vdwg.mxu0
      %583 = vmatpush.msra.mxu0 0.0
      %584 = vmatpush.msra.mxu0 0.0
      %585 = vmatpush.msra.mxu0 0.0
      %586 = vmatpush.msra.mxu0 0.0
      %587 = vmatpush.msra.mxu0 0.0
      %588 = vmatpush.msra.mxu0 0.0
      %589 = vmatpush.msra.mxu0 0.0
      %590 = vmatpush.msra.mxu0 0.0
      %591 = vmatpush.msra.mxu0 0.0
      %592 = vmatpush.msra.mxu0 0.0
      %593 = vmatpush.msra.mxu0 0.0
      %594 = vmatpush.msra.mxu0 0.0
      %595 = vmatpush.msra.mxu0 0.0
      %596 = vmatpush.msra.mxu0 0.0
      %v597 = vand.u32 %v212, 4294901760
      %v598 = vsub.f32 %v212, %v597
      %v599 = vand.u32 %v598, 4294901760
      %v600 = vsub.f32 %v598, %v599
      %v601 = vand.u32 %v600, 4294901760
      %602 = vmatpush.msra.mxu0 %v601
      %v603 = vand.u32 %v211, 4294901760
      %v604 = vsub.f32 %v211, %v603
      %v605 = vand.u32 %v604, 4294901760
      %v606 = vsub.f32 %v604, %v605
      %v607 = vand.u32 %v606, 4294901760
      %608 = vmatpush.msra.mxu0 %v607
      %v609 = vand.u32 %v524, 4294901760
      %610 = vmatmul.f32.gmra.mxu0 %v609
      %v611 = vpop.f32.mrf.mxu0
      %v612 = vadd.f32 %v557, %v611
      %v613 = vand.u32 %v526, 4294901760
      %614 = vmatmul.f32.gmra.mxu0 %v613
      %v615 = vpop.f32.mrf.mxu0
      %v616 = vadd.f32 %v565, %v615
      %v617 = vand.u32 %v528, 4294901760
      %618 = vmatmul.f32.gmra.mxu0 %v617
      %v619 = vpop.f32.mrf.mxu0
      %v620 = vadd.f32 %v573, %v619
      %v621 = vand.u32 %v530, 4294901760
      %622 = vmatmul.f32.gmra.mxu0 %v621
      %v623 = vpop.f32.mrf.mxu0
      %v624 = vadd.f32 %v581, %v623
      %625 = vdwg.mxu0
      %626 = vmatpush.msra.mxu0 0.0
      %627 = vmatpush.msra.mxu0 0.0
      %628 = vmatpush.msra.mxu0 0.0
      %629 = vmatpush.msra.mxu0 0.0
      %630 = vmatpush.msra.mxu0 0.0
      %631 = vmatpush.msra.mxu0 0.0
      %632 = vmatpush.msra.mxu0 0.0
      %633 = vmatpush.msra.mxu0 0.0
      %634 = vmatpush.msra.mxu0 0.0
      %635 = vmatpush.msra.mxu0 0.0
      %636 = vmatpush.msra.mxu0 0.0
      %637 = vmatpush.msra.mxu0 0.0
      %638 = vmatpush.msra.mxu0 0.0
      %639 = vmatpush.msra.mxu0 0.0
      %v640 = vand.u32 %v212, 4294901760
      %v641 = vsub.f32 %v212, %v640
      %642 = vmatpush.msra.mxu0 %v641
      %v643 = vand.u32 %v211, 4294901760
      %v644 = vsub.f32 %v211, %v643
      %645 = vmatpush.msra.mxu0 %v644
      %v646 = vand.u32 %v524, 4294901760
      %v647 = vsub.f32 %v524, %v646
      %648 = vmatmul.f32.gmra.mxu0 %v647
      %v649 = vpop.f32.mrf.mxu0
      %v650 = vadd.f32 %v612, %v649
      %v651 = vand.u32 %v526, 4294901760
      %v652 = vsub.f32 %v526, %v651
      %653 = vmatmul.f32.gmra.mxu0 %v652
      %v654 = vpop.f32.mrf.mxu0
      %v655 = vadd.f32 %v616, %v654
      %v656 = vand.u32 %v528, 4294901760
      %v657 = vsub.f32 %v528, %v656
      %658 = vmatmul.f32.gmra.mxu0 %v657
      %v659 = vpop.f32.mrf.mxu0
      %v660 = vadd.f32 %v620, %v659
      %v661 = vand.u32 %v530, 4294901760
      %v662 = vsub.f32 %v530, %v661
      %663 = vmatmul.f32.gmra.mxu0 %v662
      %v664 = vpop.f32.mrf.mxu0
      %v665 = vadd.f32 %v624, %v664
      %666 = vdwg.mxu0
      %667 = vmatpush.msra.mxu0 0.0
      %668 = vmatpush.msra.mxu0 0.0
      %669 = vmatpush.msra.mxu0 0.0
      %670 = vmatpush.msra.mxu0 0.0
      %671 = vmatpush.msra.mxu0 0.0
      %672 = vmatpush.msra.mxu0 0.0
      %673 = vmatpush.msra.mxu0 0.0
      %674 = vmatpush.msra.mxu0 0.0
      %675 = vmatpush.msra.mxu0 0.0
      %676 = vmatpush.msra.mxu0 0.0
      %677 = vmatpush.msra.mxu0 0.0
      %678 = vmatpush.msra.mxu0 0.0
      %679 = vmatpush.msra.mxu0 0.0
      %680 = vmatpush.msra.mxu0 0.0
      %v681 = vand.u32 %v212, 4294901760
      %682 = vmatpush.msra.mxu0 %v681
      %v683 = vand.u32 %v211, 4294901760
      %684 = vmatpush.msra.mxu0 %v683
      %v685 = vand.u32 %v524, 4294901760
      %v686 = vsub.f32 %v524, %v685
      %v687 = vand.u32 %v686, 4294901760
      %688 = vmatmul.f32.gmra.mxu0 %v687
      %v689 = vpop.f32.mrf.mxu0
      %v690 = vadd.f32 %v650, %v689
      %v691 = vand.u32 %v526, 4294901760
      %v692 = vsub.f32 %v526, %v691
      %v693 = vand.u32 %v692, 4294901760
      %694 = vmatmul.f32.gmra.mxu0 %v693
      %v695 = vpop.f32.mrf.mxu0
      %v696 = vadd.f32 %v655, %v695
      %v697 = vand.u32 %v528, 4294901760
      %v698 = vsub.f32 %v528, %v697
      %v699 = vand.u32 %v698, 4294901760
      %700 = vmatmul.f32.gmra.mxu0 %v699
      %v701 = vpop.f32.mrf.mxu0
      %v702 = vadd.f32 %v660, %v701
      %v703 = vand.u32 %v530, 4294901760
      %v704 = vsub.f32 %v530, %v703
      %v705 = vand.u32 %v704, 4294901760
      %706 = vmatmul.f32.gmra.mxu0 %v705
      %v707 = vpop.f32.mrf.mxu0
      %v708 = vadd.f32 %v665, %v707
      %709 = vdwg.mxu0
      %710 = vmatpush.msra.mxu0 0.0
      %711 = vmatpush.msra.mxu0 0.0
      %712 = vmatpush.msra.mxu0 0.0
      %713 = vmatpush.msra.mxu0 0.0
      %714 = vmatpush.msra.mxu0 0.0
      %715 = vmatpush.msra.mxu0 0.0
      %716 = vmatpush.msra.mxu0 0.0
      %717 = vmatpush.msra.mxu0 0.0
      %718 = vmatpush.msra.mxu0 0.0
      %719 = vmatpush.msra.mxu0 0.0
      %720 = vmatpush.msra.mxu0 0.0
      %721 = vmatpush.msra.mxu0 0.0
      %722 = vmatpush.msra.mxu0 0.0
      %723 = vmatpush.msra.mxu0 0.0
      %v724 = vand.u32 %v212, 4294901760
      %v725 = vsub.f32 %v212, %v724
      %v726 = vand.u32 %v725, 4294901760
      %727 = vmatpush.msra.mxu0 %v726
      %v728 = vand.u32 %v211, 4294901760
      %v729 = vsub.f32 %v211, %v728
      %v730 = vand.u32 %v729, 4294901760
      %731 = vmatpush.msra.mxu0 %v730
      %v732 = vand.u32 %v524, 4294901760
      %733 = vmatmul.f32.gmra.mxu0 %v732
      %v734 = vpop.f32.mrf.mxu0
      %v735 = vadd.f32 %v690, %v734
      %v736 = vand.u32 %v526, 4294901760
      %737 = vmatmul.f32.gmra.mxu0 %v736
      %v738 = vpop.f32.mrf.mxu0
      %v739 = vadd.f32 %v696, %v738
      %v740 = vand.u32 %v528, 4294901760
      %741 = vmatmul.f32.gmra.mxu0 %v740
      %v742 = vpop.f32.mrf.mxu0
      %v743 = vadd.f32 %v702, %v742
      %v744 = vand.u32 %v530, 4294901760
      %745 = vmatmul.f32.gmra.mxu0 %v744
      %v746 = vpop.f32.mrf.mxu0
      %v747 = vadd.f32 %v708, %v746
      %748 = vdwg.mxu0
      %749 = vmatpush.msra.mxu0 0.0
      %750 = vmatpush.msra.mxu0 0.0
      %751 = vmatpush.msra.mxu0 0.0
      %752 = vmatpush.msra.mxu0 0.0
      %753 = vmatpush.msra.mxu0 0.0
      %754 = vmatpush.msra.mxu0 0.0
      %755 = vmatpush.msra.mxu0 0.0
      %756 = vmatpush.msra.mxu0 0.0
      %757 = vmatpush.msra.mxu0 0.0
      %758 = vmatpush.msra.mxu0 0.0
      %759 = vmatpush.msra.mxu0 0.0
      %760 = vmatpush.msra.mxu0 0.0
      %761 = vmatpush.msra.mxu0 0.0
      %762 = vmatpush.msra.mxu0 0.0
      %v763 = vand.u32 %v212, 4294901760
      %764 = vmatpush.msra.mxu0 %v763
      %v765 = vand.u32 %v211, 4294901760
      %766 = vmatpush.msra.mxu0 %v765
      %v767 = vand.u32 %v524, 4294901760
      %768 = vmatmul.f32.gmra.mxu0 %v767
      %v769 = vpop.f32.mrf.mxu0
      %v770 = vadd.f32 %v735, %v769
      %v771 = vand.u32 %v526, 4294901760
      %772 = vmatmul.f32.gmra.mxu0 %v771
      %v773 = vpop.f32.mrf.mxu0
      %v774 = vadd.f32 %v739, %v773
      %v775 = vand.u32 %v528, 4294901760
      %776 = vmatmul.f32.gmra.mxu0 %v775
      %v777 = vpop.f32.mrf.mxu0
      %v778 = vadd.f32 %v743, %v777
      %v779 = vand.u32 %v530, 4294901760
      %780 = vmatmul.f32.gmra.mxu0 %v779
      %v781 = vpop.f32.mrf.mxu0
      %v782 = vadd.f32 %v747, %v781
      %783 = vdwg.mxu0
      %s784 = scalar_lea.vmem %s209, 16
      %785 = vst.msk [vmem:[%s784] sm:$0xff] %vm482, %v770
      %786 = vst.msk [vmem:[%s784 + $0x20] sm:$0xff] %vm482, %v774
      %787 = vst.msk [vmem:[%s784 + $0x40] sm:$0xff] %vm482, %v778
      %788 = vst.msk [vmem:[%s784 + $0x60] sm:$0xff] %vm482, %v782
      %793 = vrot.lane.b32.xlu0 %v770, 120
      %v794 = vpop.permute.xlu0 %793
      %795 = vrot.lane.b32.xlu0 %v774, 120
      %v796 = vpop.permute.xlu0 %795
      %797 = vrot.lane.b32.xlu0 %v778, 120
      %v798 = vpop.permute.xlu0 %797
      %799 = vrot.lane.b32.xlu0 %v782, 120
      %v800 = vpop.permute.xlu0 %799
      %s805 = scalar_lea.vmem %s209, 24
      %806 = vst.msk [vmem:[%s805] sm:$0xff] %vm482, %v794
      %807 = vst.msk [vmem:[%s805 + $0x20] sm:$0xff] %vm482, %v796
      %808 = vst.msk [vmem:[%s805 + $0x40] sm:$0xff] %vm482, %v798
      %809 = vst.msk [vmem:[%s805 + $0x60] sm:$0xff] %vm482, %v800
      %s810 = smul.u32 4, %s19
      %p811 = scmp.lt.s32.totalorder %s18, 1
      %s812 = scalar_select %p811, %s18, 1
      %p813 = scmp.lt.s32.totalorder %s810, 3
      %s814 = scalar_select %p813, %s810, 3
      %p815 = scmp.lt.s32.totalorder %s20, 0
      %s816 = scalar_select %p815, %s20, 0
      %s817 = smul.addr %s814, 4
      %s818 = sadd.s32 %s816, %s817
      %s819 = smul.addr %s812, 16
      %s820 = sadd.s32 %s818, %s819
      %s821 = smul.addr %s820, 8
      %s822 = scalar_lea.vmem %s2, %s821
      // Predicated region
      $region29: #{inv_pixel_shuffle.1} parent=27 // pred_check
        %p823 = pneg %p105
      $region30: #{inv_pixel_shuffle.1} parent=27 // pred_check_branch
        %825 = sbr.rel (%p823) target = $region32
      $region31: #{inv_pixel_shuffle.1} parent=27 // pred_region
        %s826 = smul.u32 4, %s19
      $region32: #{inv_pixel_shuffle.1} parent=27 // pred_fallthru
        _
    $region28: #{inv_pixel_shuffle.1} parent=5 // pred_fallthru
      _
    %p827 = scmp.le.s32.totalorder 2, %s8
    // Predicated region
    $region33: #{inv_pixel_shuffle.1} parent=5 // pred_check
      %p828 = pneg %p827
    $region34: #{inv_pixel_shuffle.1} parent=5 // pred_check_branch
      %830 = sbr.rel (%p828) target = $region36
    $region35: #{inv_pixel_shuffle.1} parent=5 // pred_region
      %s831 = ssub.s32 %s8, 2
      // Predicated region
      $region37: #{inv_pixel_shuffle.1} parent=35 // pred_check
        %p832 = pneg %p111
      $region38: #{inv_pixel_shuffle.1} parent=35 // pred_check_branch
        %834 = sbr.rel (%p832) target = $region40
      $region39: #{inv_pixel_shuffle.1} parent=35 // pred_region
        %s835 = smul.u32 4, %s22
        %p836 = scmp.lt.s32.totalorder %s21, 1
        %s837 = scalar_select %p836, %s21, 1
        %p838 = scmp.lt.s32.totalorder %s835, 3
        %s839 = scalar_select %p838, %s835, 3
        %p840 = scmp.lt.s32.totalorder %s23, 0
        %s841 = scalar_select %p840, %s23, 0
        %s842 = smul.addr %s839, 4
        %s843 = sadd.s32 %s841, %s842
        %s844 = smul.addr %s837, 16
        %s845 = sadd.s32 %s843, %s844
        %s846 = smul.addr %s845, 8
        %s847 = scalar_lea.vmem %s2, %s846
      $region40: #{inv_pixel_shuffle.1} parent=35 // pred_fallthru
        _
    $region36: #{inv_pixel_shuffle.1} parent=5 // pred_fallthru
      _
  $region6: #{inv_pixel_shuffle.1} parent=0 // loop_footer
    %s12 = sadd.s32 1, %s8
  $region7: #{inv_pixel_shuffle.1} parent=0 // loop_footer_branch
    %7 = sbr.rel target = $region3
  $region8: #{inv_pixel_shuffle.1} parent=0 // loop_exit
    _

</llo_original>
